<compile_context>
chip_gen: v7x
topology: tpu7x:2x2x1
jax: 0.10.0
libtpu: 0.0.40
codegen_flags: <defaults>
</compile_context>

<pallas_src>
import jax
import jax.numpy as jnp
from jax import lax
from jax.experimental import pallas as pl
from jax.experimental.pallas import tpu as pltpu


def _round_up(v: int, m: int) -> int:
    return ((v + m - 1) // m) * m


# ---------------------------------------------------------------------------
# Path A kernel: full (D, D) Gram accumulator in VMEM.
# ---------------------------------------------------------------------------
def _make_full_gram_kernel(n_rows: int, tn: int, mask_rows: bool):
    def kernel(x_ref, y_ref, o_ref, g_acc):
        k = pl.program_id(0)

        @pl.when(k == 0)
        def _():
            g_acc[...] = jnp.zeros_like(g_acc)

        xv = x_ref[...]
        yv = y_ref[...]
        if mask_rows:
            # Only emitted when N % tn != 0: select zeros for the ragged tail
            # rows (OOB block data is unspecified) before it touches the MXU.
            row = lax.broadcasted_iota(jnp.int32, xv.shape, 0) + k * tn
            valid = row < n_rows
            xv = jnp.where(valid, xv, 0.0)
            yv = jnp.where(valid, yv, 0.0)

        # Contract over the leading (sample) axis directly on the MXU: this is
        # x_chunk.T @ y_chunk without an XLU transpose each grid step.
        g_acc[...] += lax.dot_general(
            xv,
            yv,
            dimension_numbers=(((0,), (0,)), ((), ())),
            preferred_element_type=jnp.float32,
        )

        @pl.when(k == pl.num_programs(0) - 1)
        def _():
            g = g_acc[...]
            o_ref[0, 0] = jnp.sum(g * g)

    return kernel


# ---------------------------------------------------------------------------
# Path B kernel: (td, td) Gram tile + per-tile scalar partial (large D).
# ---------------------------------------------------------------------------
def _make_tiled_gram_kernel(n_rows: int, n_cols: int, tn: int, td: int,
                            mask_rows: bool, mask_cols: bool):
    def kernel(x_ref, y_ref, o_ref, g_acc):
        i = pl.program_id(0)
        j = pl.program_id(1)
        k = pl.program_id(2)

        @pl.when(k == 0)
        def _():
            g_acc[...] = jnp.zeros_like(g_acc)

        xv = x_ref[...]
        yv = y_ref[...]
        if mask_rows:
            row = lax.broadcasted_iota(jnp.int32, (tn, td), 0) + k * tn
            valid = row < n_rows
            xv = jnp.where(valid, xv, 0.0)
            yv = jnp.where(valid, yv, 0.0)
        if mask_cols:
            col = lax.broadcasted_iota(jnp.int32, (tn, td), 1)
            xv = jnp.where(col + i * td < n_cols, xv, 0.0)
            yv = jnp.where(col + j * td < n_cols, yv, 0.0)

        g_acc[...] += lax.dot_general(
            xv,
            yv,
            dimension_numbers=(((0,), (0,)), ((), ())),
            preferred_element_type=jnp.float32,
        )

        @pl.when(k == pl.num_programs(2) - 1)
        def _():
            g = g_acc[...]
            o_ref[0, 0] = jnp.sum(g * g)  # partial of sum(G**2) for this (i, j)

    return kernel


# ---------------------------------------------------------------------------
# Wrapper
# ---------------------------------------------------------------------------
_FULL_GRAM_MAX_BYTES = 8 * 1024 * 1024  # above this, tile the Gram (path B)
_VMEM_LIMIT_CAP = 48 * 1024 * 1024      # conservative vs v7x's 64 MiB physical VMEM
_VMEM_LIMIT_FLOOR = 32 * 1024 * 1024


def _vmem_limit(acc_bytes: int, tn: int, block_d: int, itemsize: int) -> int:
    # accumulator + 2 input streams x 2 pipeline buffers, with headroom.
    io_bytes = 2 * 2 * tn * block_d * itemsize
    need = int(1.5 * (acc_bytes + io_bytes)) + (2 << 20)
    return int(min(_VMEM_LIMIT_CAP, max(_VMEM_LIMIT_FLOOR, need)))


def unnormalized_simple_cka(x, y, *, tn=None, td=512, use_tiled=None):
    """sum((x.T @ y) ** 2) for x, y of shape (N, D). Returns an f32 scalar.

    NOTE: at tiny shapes (D << 128 or N*D of a few KiB) the problem is
    dominated by fixed pallas_call overhead and plain XLA is just as fast;
    this kernel is meant for lane-dense D (ideally a multiple of 128) and
    inputs of at least a few MB.
    """
    assert x.shape == y.shape, "feature shape should be equal if you use CKA"
    assert x.ndim == 2, "x, y should be (N, D) tensors"
    N, D = x.shape
    itemsize = jnp.dtype(x.dtype).itemsize

    # Row tile: when N is small, take the whole array in one block (block ==
    # full dims, so no (8,128) constraint and no masking); otherwise 512 rows
    # keeps the DMA pipeline fed without blowing VMEM.
    if tn is None:
        tn = N if N <= 512 else 512
    else:
        tn = max(1, min(int(tn), N))
        if tn != N and tn % 8 != 0:
            tn = min(_round_up(tn, 8), N)
    n_k = pl.cdiv(N, tn)
    mask_rows = (N % tn) != 0  # ragged N tail -> in-kernel row masking

    acc_bytes_full = 4 * D * D
    if use_tiled is None:
        use_tiled = acc_bytes_full > _FULL_GRAM_MAX_BYTES

    if not use_tiled:
        # ---- Path A: full (D, D) Gram accumulator in VMEM ------------------
        kernel = _make_full_gram_kernel(N, tn, mask_rows)
        out = pl.pallas_call(
            kernel,
            out_shape=jax.ShapeDtypeStruct((1, 1), jnp.float32),
            grid_spec=pltpu.PrefetchScalarGridSpec(
                num_scalar_prefetch=0,
                grid=(n_k,),
                in_specs=[
                    pl.BlockSpec((tn, D), lambda k: (k, 0)),
                    pl.BlockSpec((tn, D), lambda k: (k, 0)),
                ],
                out_specs=pl.BlockSpec(memory_space=pltpu.MemorySpace.SMEM),
                scratch_shapes=[pltpu.VMEM((D, D), jnp.float32)],
            ),
            compiler_params=pltpu.CompilerParams(
                dimension_semantics=("arbitrary",),  # N is a reduction axis
                vmem_limit_bytes=_vmem_limit(acc_bytes_full, tn, D, itemsize),
            ),
            cost_estimate=pl.CostEstimate(
                flops=2 * N * D * D,
                transcendentals=0,
                bytes_accessed=2 * N * D * itemsize + 4,
            ),
        )(x, y)
        return out[0, 0]

    # ---- Path B: tiled Gram, per-tile scalar partials, parallel (i, j) -----
    td = max(128, _round_up(int(td), 128))
    gd = pl.cdiv(D, td)
    mask_cols = (D % td) != 0  # ragged D tail -> in-kernel column masking
    kernel = _make_tiled_gram_kernel(N, D, tn, td, mask_rows, mask_cols)
    partials = pl.pallas_call(
        kernel,
        out_shape=jax.ShapeDtypeStruct((gd, gd), jnp.float32),
        grid_spec=pltpu.PrefetchScalarGridSpec(
            num_scalar_prefetch=0,
            grid=(gd, gd, n_k),
            in_specs=[
                pl.BlockSpec((tn, td), lambda i, j, k: (k, i)),
                pl.BlockSpec((tn, td), lambda i, j, k: (k, j)),
            ],
            out_specs=pl.BlockSpec(
                (1, 1),
                lambda i, j, k: (i, j),
                memory_space=pltpu.MemorySpace.SMEM,
            ),
            scratch_shapes=[pltpu.VMEM((td, td), jnp.float32)],
        ),
        compiler_params=pltpu.CompilerParams(
            # (i, j) output tiles are independent -> both TensorCores on v7x;
            # k (the N reduction) must stay sequential ("arbitrary").
            dimension_semantics=("parallel", "parallel", "arbitrary"),
            vmem_limit_bytes=_vmem_limit(4 * td * td, tn, td, itemsize),
        ),
        cost_estimate=pl.CostEstimate(
            flops=2 * N * (gd * td) * (gd * td),
            transcendentals=0,
            bytes_accessed=2 * gd * N * D * itemsize + gd * gd * 4,
        ),
    )(x, y)
    # TODO(synk): for very large gd this tiny host-side sum could be folded
    # in-kernel via a cross-tile SMEM accumulator instead.
    return jnp.sum(partials)


if __name__ == "__main__":
    key = jax.random.PRNGKey(0)
    kx, ky = jax.random.split(key)

    # Small shapes consistent with the module: (N, D) = (seq=8, hidden=32).
    N, D = 8, 32
    x = jax.random.normal(kx, (N, D), dtype=jnp.float32)
    y = jax.random.normal(ky, (N, D), dtype=jnp.float32)
    result = jax.block_until_ready(unnormalized_simple_cka(x, y))
    ref = jnp.sum((x.T @ y) ** 2)
    assert jnp.allclose(result, ref, rtol=1e-5, atol=1e-5), (result, ref)

    # Ragged-N case: multi-step grid accumulation + in-kernel tail-row masking.
    kx2, ky2 = jax.random.split(jax.random.PRNGKey(1))
    N2, D2 = 100, 32
    x2 = jax.random.normal(kx2, (N2, D2), dtype=jnp.float32)
    y2 = jax.random.normal(ky2, (N2, D2), dtype=jnp.float32)
    result2 = jax.block_until_ready(unnormalized_simple_cka(x2, y2, tn=16))
    ref2 = jnp.sum((x2.T @ y2) ** 2)
    assert jnp.allclose(result2, ref2, rtol=1e-4, atol=1e-3), (result2, ref2)

    # Forced tiled-Gram path: exercises the (i, j, k) grid + column masking.
    kx3, ky3 = jax.random.split(jax.random.PRNGKey(2))
    N3, D3 = 64, 320
    x3 = jax.random.normal(kx3, (N3, D3), dtype=jnp.float32)
    y3 = jax.random.normal(ky3, (N3, D3), dtype=jnp.float32)
    result3 = jax.block_until_ready(
        unnormalized_simple_cka(x3, y3, td=128, use_tiled=True)
    )
    ref3 = jnp.sum((x3.T @ y3) ** 2)
    assert jnp.allclose(result3, ref3, rtol=1e-4, atol=1e-2), (result3, ref3)

    print("KERNEL_OK")
</pallas_src>

<mosaic_0001>
module attributes {stable_mosaic.version = 11 : i64} {
  func.func @kernel(%arg0: i32, %arg1: memref<8x32xf32, #tpu.memory_space<vmem>>, %arg2: memref<8x32xf32, #tpu.memory_space<vmem>>, %arg3: memref<1x1xf32, #tpu.memory_space<smem>>, %arg4: memref<32x32xf32, #tpu.memory_space<vmem>>) attributes {dimension_semantics = [#tpu.dimension_semantics<arbitrary>], iteration_bounds = array<i64: 1>, scalar_prefetch = 0 : i64, scratch_operands = 1 : i64, tpu.core_type = #tpu.core_type<tc>, window_params = [{transform_indices = @transform_0, window_bounds = array<i64: 8, 32>}, {transform_indices = @transform_1, window_bounds = array<i64: 8, 32>}, {transform_indices = @transform_2, window_bounds = array<i64: 1, 1>}]} {
    %c0_i32 = arith.constant 0 : i32
    %0 = arith.cmpi eq, %arg0, %c0_i32 : i32
    %1 = arith.extui %0 : i1 to i32
    %c0_i32_0 = arith.constant 0 : i32
    %2 = arith.cmpi ne, %1, %c0_i32_0 : i32
    scf.if %2 {
      %cst_10 = arith.constant 0.000000e+00 : f32
      %12 = vector.broadcast %cst_10 : f32 to vector<32x32xf32>
      %c0_11 = arith.constant 0 : index
      %c0_12 = arith.constant 0 : index
      %13 = vector.load %arg4[%c0_11, %c0_12] : memref<32x32xf32, #tpu.memory_space<vmem>>, vector<32x32xf32>
      tpu.vector_store %arg4[%c0_11, %c0_12], %12 {strides = array<i32>} : memref<32x32xf32, #tpu.memory_space<vmem>>, vector<32x32xf32>,
    } else {
    }
    %c0 = arith.constant 0 : index
    %c0_1 = arith.constant 0 : index
    %3 = vector.load %arg1[%c0, %c0_1] : memref<8x32xf32, #tpu.memory_space<vmem>>, vector<8x32xf32>
    %c0_2 = arith.constant 0 : index
    %c0_3 = arith.constant 0 : index
    %4 = vector.load %arg2[%c0_2, %c0_3] : memref<8x32xf32, #tpu.memory_space<vmem>>, vector<8x32xf32>
    %c0_4 = arith.constant 0 : index
    %c0_5 = arith.constant 0 : index
    %5 = vector.load %arg4[%c0_4, %c0_5] : memref<32x32xf32, #tpu.memory_space<vmem>>, vector<32x32xf32>
    %cst = arith.constant dense<0.000000e+00> : vector<32x32xf32>
    %6 = tpu.matmul %3, %4, %cst {dimension_numbers = #tpu.dot_dimension_numbers<[0], [0], [1], [1], [0, 1, 1, 1], [], []>} : vector<8x32xf32>, vector<8x32xf32>, vector<32x32xf32> -> vector<32x32xf32>
    %7 = arith.addf %5, %6 : vector<32x32xf32>
    %c0_6 = arith.constant 0 : index
    %c0_7 = arith.constant 0 : index
    %8 = vector.load %arg4[%c0_6, %c0_7] : memref<32x32xf32, #tpu.memory_space<vmem>>, vector<32x32xf32>
    tpu.vector_store %arg4[%c0_6, %c0_7], %7 {strides = array<i32>} : memref<32x32xf32, #tpu.memory_space<vmem>>, vector<32x32xf32>,
    %c0_i32_8 = arith.constant 0 : i32
    %9 = arith.cmpi eq, %arg0, %c0_i32_8 : i32
    %10 = arith.extui %9 : i1 to i32
    %c0_i32_9 = arith.constant 0 : i32
    %11 = arith.cmpi ne, %10, %c0_i32_9 : i32
    scf.if %11 {
      %c0_10 = arith.constant 0 : index
      %c0_11 = arith.constant 0 : index
      %12 = vector.load %arg4[%c0_10, %c0_11] : memref<32x32xf32, #tpu.memory_space<vmem>>, vector<32x32xf32>
      %13 = arith.mulf %12, %12 : vector<32x32xf32>
      %14 = vector.shape_cast %13 : vector<32x32xf32> to vector<1x32x32xf32>
      %cst_12 = arith.constant dense<0.000000e+00> : vector<1xf32>
      %15 = vector.multi_reduction <add>, %14, %cst_12 [1, 2] : vector<1x32x32xf32> to vector<1xf32>
      %16 = vector.shape_cast %15 : vector<1xf32> to vector<1x1x1xf32>
      %17 = vector.extract %16[0, 0, 0] : f32 from vector<1x1x1xf32>
      %c0_13 = arith.constant 0 : index
      %c0_14 = arith.constant 0 : index
      %18 = memref.load %arg3[%c0_13, %c0_14] : memref<1x1xf32, #tpu.memory_space<smem>>
      memref.store %17, %arg3[%c0_13, %c0_14] : memref<1x1xf32, #tpu.memory_space<smem>>
    } else {
    }
    return
  }
  func.func @transform_0(%arg0: i32) -> (i32, i32) {
    %c0_i32 = arith.constant 0 : i32
    %c0_i32_0 = arith.constant 0 : i32
    return %arg0, %c0_i32 : i32, i32
  }
  func.func @transform_1(%arg0: i32) -> (i32, i32) {
    %c0_i32 = arith.constant 0 : i32
    %c0_i32_0 = arith.constant 0 : i32
    return %arg0, %c0_i32 : i32, i32
  }
  func.func @transform_2(%arg0: i32) -> (i32, i32) {
    %c0_i32 = arith.constant 0 : i32
    %c0_i32_0 = arith.constant 0 : i32
    %c0_i32_1 = arith.constant 0 : i32
    return %c0_i32, %c0_i32_0 : i32, i32
  }
}

</mosaic_0001>

<llo_original>
// kernel: tpu_custom_call.1
$region0: #{tpu_custom_call.1}
  #allocation0 [shape = 'u32[]', space=smem, size = 0x4, offset = 0x4, fixed_abs, tag = 'smem constant byte address 0x4 - core index']
  #allocation1 [shape = 'u32[144,128]{1,0:T(1,128)}', space=vmem, size = 0x12000, scoped, tag = 'internal scratch']
  #allocation2 [shape = 'f32[32,32]{1,0:T(8,128)}', space=vmem, size = 0x4000, scoped, tag = 'scratch operand']
  %s0 = inlined_call_operand.hbm [shape: f32[8,32], index: 0, kind: input, shape index: {}]
  %s1 = inlined_call_operand.hbm [shape: f32[8,32], index: 1, kind: input, shape index: {}]
  %s2 = inlined_call_operand.hbm [shape: f32[1,1], index: 2, kind: output, shape index: {}]
  %s3 = sld [smem:[#allocation0]]
  $region34: #{tpu_custom_call.1} parent=0
    _
  %s5 = ssub.s32 1, %s3
  %s6 = scalar_select 0, %s5, %s3
  $region1: #{tpu_custom_call.1} parent=0
    #allocation3 [shape = 'u8[4096]{0}', space=vmem, size = 0x1000, scoped, tag = 'input window, operand 0, single buffered']
    #allocation4 [shape = 's32[1]{0}', space=sflag, size = 0x4, scoped, tag = 'scoped memory for tpu_custom_call.1']
    #allocation5 [shape = 's32[1]{0}', space=sflag, size = 0x4, scoped, tag = 'scoped memory for tpu_custom_call.1']
    #allocation6 [shape = 'u8[4096]{0}', space=vmem, size = 0x1000, scoped, tag = 'input window, operand 1, single buffered']
    #allocation7 [shape = 's32[1]{0}', space=sflag, size = 0x4, scoped, tag = 'scoped memory for tpu_custom_call.1']
    #allocation8 [shape = 'u8[512]{0}', space=smem, size = 0x200, scoped, tag = 'output window, operand 0, single buffered']
    %7 = vsyncpa [#allocation4], 0
    %8 = vsyncpa [#allocation7], 0
    %9 = vsyncpa [#allocation5], 0
    // Predicated region
    $region2: #{tpu_custom_call.1} parent=1 // pred_check
      _
    $region3: #{tpu_custom_call.1} parent=1 // pred_check_branch
      %11 = sbr.rel (0) target = $region5
    $region4: #{tpu_custom_call.1} parent=1 // pred_region
      %s13 = ssub.s32 128, 128
      %14 = vsyncadd [#allocation4], %s13
      %s16 = sshll.u32 [#allocation3], 4
      %s17 = int_to_ptr.vmem [resolvable:$true] %s16
      %19 = dma.hbm_to_vmem [thread:$0]  %s0, 128, %s17, [#allocation4]
    $region5: #{tpu_custom_call.1} parent=1 // pred_fallthru
      _
    // Predicated region
    $region6: #{tpu_custom_call.1} parent=1 // pred_check
      _
    $region7: #{tpu_custom_call.1} parent=1 // pred_check_branch
      %21 = sbr.rel (0) target = $region9
    $region8: #{tpu_custom_call.1} parent=1 // pred_region
      %s23 = ssub.s32 128, 128
      %24 = vsyncadd [#allocation7], %s23
      %s26 = sshll.u32 [#allocation6], 4
      %s27 = int_to_ptr.vmem [resolvable:$true] %s26
      %29 = dma.hbm_to_vmem [thread:$0]  %s1, 128, %s27, [#allocation7]
    $region9: #{tpu_custom_call.1} parent=1 // pred_fallthru
      _
    // Predicated region
    $region10: #{tpu_custom_call.1} parent=1 // pred_check
      _
    $region11: #{tpu_custom_call.1} parent=1 // pred_check_branch
      %31 = sbr.rel (0) target = $region13
    $region12: #{tpu_custom_call.1} parent=1 // pred_region
      %32 = dma.done [#allocation4], 128
    $region13: #{tpu_custom_call.1} parent=1 // pred_fallthru
      _
    // Predicated region
    $region14: #{tpu_custom_call.1} parent=1 // pred_check
      _
    $region15: #{tpu_custom_call.1} parent=1 // pred_check_branch
      %34 = sbr.rel (0) target = $region17
    $region16: #{tpu_custom_call.1} parent=1 // pred_region
      %35 = dma.done [#allocation7], 128
    $region17: #{tpu_custom_call.1} parent=1 // pred_fallthru
      _
    %p36 = scmp.eq.s32.totalorder 0, 0
    // Predicated region
    $region18: #{tpu_custom_call.1} parent=1 // pred_check
      %p37 = pneg %p36
    $region19: #{tpu_custom_call.1} parent=1 // pred_check_branch
      %39 = sbr.rel (%p37) target = $region21
    $region20: #{tpu_custom_call.1} parent=1 // pred_region
      %vm40 = vcmask 261120
      %41 = vst.msk [vmem:[#allocation2] sm:$0xff] %vm40, 0.0
      %42 = vst.msk [vmem:[#allocation2 + $0x8] sm:$0xff] %vm40, 0.0
      %43 = vst.msk [vmem:[#allocation2 + $0x10] sm:$0xff] %vm40, 0.0
      %44 = vst.msk [vmem:[#allocation2 + $0x18] sm:$0xff] %vm40, 0.0
    $region21: #{tpu_custom_call.1} parent=1 // pred_fallthru
      _
    %v45 = vld [vmem:[#allocation3] sm:$0xff]
    %v46 = vld [vmem:[#allocation6] sm:$0xff]
    %v47 = vld [vmem:[#allocation2] sm:$0xff]
    %v48 = vld [vmem:[#allocation2 + $0x8] sm:$0xff]
    %v49 = vld [vmem:[#allocation2 + $0x10] sm:$0xff]
    %v50 = vld [vmem:[#allocation2 + $0x18] sm:$0xff]
    %51 = vxpose.xlu0.b32.start [1/16] %v45, 128
    %52 = vxpose.xlu0.b32.cont [2/16] 0.0, 128
    %53 = vxpose.xlu0.b32.cont [3/16] 0.0, 128
    %54 = vxpose.xlu0.b32.cont [4/16] 0.0, 128
    %55 = vxpose.xlu0.b32.cont [5/16] 0.0, 128
    %56 = vxpose.xlu0.b32.cont [6/16] 0.0, 128
    %57 = vxpose.xlu0.b32.cont [7/16] 0.0, 128
    %58 = vxpose.xlu0.b32.cont [8/16] 0.0, 128
    %59 = vxpose.xlu0.b32.cont [9/16] 0.0, 128
    %60 = vxpose.xlu0.b32.cont [10/16] 0.0, 128
    %61 = vxpose.xlu0.b32.cont [11/16] 0.0, 128
    %62 = vxpose.xlu0.b32.cont [12/16] 0.0, 128
    %63 = vxpose.xlu0.b32.cont [13/16] 0.0, 128
    %64 = vxpose.xlu0.b32.cont [14/16] 0.0, 128
    %65 = vxpose.xlu0.b32.cont [15/16] 0.0, 128
    %66 = vxpose.xlu0.b32.end [16/16] 0.0, 128
    %v67 = vpop.trf.xlu0
    %v68 = vpop.trf.xlu0
    %v69 = vpop.trf.xlu0
    %v70 = vpop.trf.xlu0
    %v71 = vpop.trf.xlu0
    %v72 = vpop.trf.xlu0
    %v73 = vpop.trf.xlu0
    %v74 = vpop.trf.xlu0
    %v75 = vpop.trf.xlu0
    %v76 = vpop.trf.xlu0
    %v77 = vpop.trf.xlu0
    %v78 = vpop.trf.xlu0
    %v79 = vpop.trf.xlu0
    %v80 = vpop.trf.xlu0
    %v81 = vpop.trf.xlu0
    %v82 = vpop.trf.xlu0
    %vm83 = vcmask 64512
    %v85 = vsel %vm83, %v67, 0
    %v88 = vsel %vm83, %v68, 0
    %v91 = vsel %vm83, %v69, 0
    %v94 = vsel %vm83, %v70, 0
    %96 = vmatprep.subr.mxu0 0.0
    %97 = vmatpush1.msra.mxu0 %v46
    %98 = vmatprep.subr.mxu0 0.0
    %99 = vmatpush1.msra.mxu0 0.0
    %100 = vmatprep.subr.mxu0 0.0
    %101 = vmatpush1.msra.mxu0 0.0
    %102 = vmatprep.subr.mxu0 0.0
    %103 = vmatpush1.msra.mxu0 0.0
    %104 = vmatprep.subr.mxu0 0.0
    %105 = vmatpush1.msra.mxu0 0.0
    %106 = vmatprep.subr.mxu0 0.0
    %107 = vmatpush1.msra.mxu0 0.0
    %108 = vmatprep.subr.mxu0 0.0
    %109 = vmatpush1.msra.mxu0 0.0
    %110 = vmatprep.subr.mxu0 0.0
    %111 = vmatpush1.msra.mxu0 0.0
    %112 = vmatprep.subr.mxu0 0.0
    %113 = vmatpush1.msra.mxu0 0.0
    %114 = vmatprep.subr.mxu0 0.0
    %115 = vmatpush1.msra.mxu0 0.0
    %116 = vmatprep.subr.mxu0 0.0
    %117 = vmatpush1.msra.mxu0 0.0
    %118 = vmatprep.subr.mxu0 0.0
    %119 = vmatpush1.msra.mxu0 0.0
    %120 = vmatprep.subr.mxu0 0.0
    %121 = vmatpush1.msra.mxu0 0.0
    %122 = vmatprep.subr.mxu0 0.0
    %123 = vmatpush1.msra.mxu0 0.0
    %124 = vmatprep.subr.mxu0 0.0
    %125 = vmatpush1.msra.mxu0 0.0
    %126 = vmatprep.subr.mxu0 0.0
    %127 = vmatpush1.msra.mxu0 0.0
    %128 = vmatprep.subr.mxu0 0.0
    %129 = vmatpush1.msra.mxu0 0.0
    %130 = vmatprep.subr.mxu0 0.0
    %131 = vmatpush1.msra.mxu0 0.0
    %132 = vmatprep.subr.mxu0 0.0
    %133 = vmatpush1.msra.mxu0 0.0
    %134 = vmatprep.subr.mxu0 0.0
    %135 = vmatpush1.msra.mxu0 0.0
    %136 = vmatprep.subr.mxu0 0.0
    %137 = vmatpush1.msra.mxu0 0.0
    %138 = vmatprep.subr.mxu0 0.0
    %139 = vmatpush1.msra.mxu0 0.0
    %140 = vmatprep.subr.mxu0 0.0
    %141 = vmatpush1.msra.mxu0 0.0
    %142 = vmatprep.subr.mxu0 0.0
    %143 = vmatpush1.msra.mxu0 0.0
    %144 = vmatprep.subr.mxu0 0.0
    %145 = vmatpush1.msra.mxu0 0.0
    %146 = vmatprep.subr.mxu0 0.0
    %147 = vmatpush1.msra.mxu0 0.0
    %148 = vmatprep.subr.mxu0 0.0
    %149 = vmatpush1.msra.mxu0 0.0
    %150 = vmatprep.subr.mxu0 0.0
    %151 = vmatpush1.msra.mxu0 0.0
    %152 = vmatprep.subr.mxu0 0.0
    %153 = vmatpush1.msra.mxu0 0.0
    %154 = vmatprep.subr.mxu0 0.0
    %155 = vmatpush1.msra.mxu0 0.0
    %156 = vmatprep.subr.mxu0 0.0
    %157 = vmatpush1.msra.mxu0 0.0
    %158 = vmatprep.subr.mxu0 0.0
    %159 = vmatpush1.msra.mxu0 0.0
    %160 = vmatprep.mubr.f32.mxu0 0.0
    %161 = vmatmul.mubr.f32.gmra.mrb[0].mxu0 %v85
    %v162 = vpop.f32.mrb[0].mxu0
    %v163 = vadd.f32 0.0, %v162
    %v164 = vpop.f32.mrb[0].mxu0
    %165 = vmatprep.mubr.f32.mxu0 0.0
    %166 = vmatmul.mubr.f32.gmra.mrb[0].mxu0 %v88
    %v167 = vpop.f32.mrb[0].mxu0
    %v168 = vadd.f32 0.0, %v167
    %v169 = vpop.f32.mrb[0].mxu0
    %170 = vmatprep.mubr.f32.mxu0 0.0
    %171 = vmatmul.mubr.f32.gmra.mrb[0].mxu0 %v91
    %v172 = vpop.f32.mrb[0].mxu0
    %v173 = vadd.f32 0.0, %v172
    %v174 = vpop.f32.mrb[0].mxu0
    %175 = vmatprep.mubr.f32.mxu0 0.0
    %176 = vmatmul.mubr.f32.gmra.mrb[0].mxu0 %v94
    %v177 = vpop.f32.mrb[0].mxu0
    %v178 = vadd.f32 0.0, %v177
    %v179 = vpop.f32.mrb[0].mxu0
    %180 = vdwg.mxu0
    %v181 = vadd.f32 %v47, %v163
    %v182 = vadd.f32 %v48, %v168
    %v183 = vadd.f32 %v49, %v173
    %v184 = vadd.f32 %v50, %v178
    %vm185 = vcmask 261120
    %186 = vst.msk [vmem:[#allocation2] sm:$0xff] %vm185, %v181
    %187 = vst.msk [vmem:[#allocation2 + $0x8] sm:$0xff] %vm185, %v182
    %188 = vst.msk [vmem:[#allocation2 + $0x10] sm:$0xff] %vm185, %v183
    %189 = vst.msk [vmem:[#allocation2 + $0x18] sm:$0xff] %vm185, %v184
    // Predicated region
    $region22: #{tpu_custom_call.1} parent=1 // pred_check
      %p190 = pneg %p36
    $region23: #{tpu_custom_call.1} parent=1 // pred_check_branch
      %192 = sbr.rel (%p190) target = $region25
    $region24: #{tpu_custom_call.1} parent=1 // pred_region
      %v193 = vld [vmem:[#allocation2] sm:$0xff]
      %v194 = vld [vmem:[#allocation2 + $0x8] sm:$0xff]
      %v195 = vld [vmem:[#allocation2 + $0x10] sm:$0xff]
      %v196 = vld [vmem:[#allocation2 + $0x18] sm:$0xff]
      %v197 = vmul.f32 %v193, %v193
      %v198 = vmul.f32 %v194, %v194
      %v199 = vmul.f32 %v195, %v195
      %v200 = vmul.f32 %v196, %v196
      %v201 = vsel %vm185, %v197, 0.0
      %v202 = vsel %vm185, %v198, 0.0
      %v203 = vadd.f32 %v201, %v202
      %v204 = vsel %vm185, %v199, 0.0
      %v205 = vadd.f32 %v203, %v204
      %v206 = vsel %vm185, %v200, 0.0
      %v207 = vadd.f32 %v205, %v206
      %208 = vadd.xlane.f32.xlu0 %v207
      %v209 = vpop.xlane.xlu0 %208
      %v210 = vrot.slane %v209, 4
      %v211 = vadd.f32 %v209, %v210
      %v212 = vrot.slane %v211, 2
      %v213 = vadd.f32 %v211, %v212
      %v214 = vrot.slane %v213, 1
      %v215 = vadd.f32 %v213, %v214
      %s216 = vtos %v215
      %s217 = scalar_lea.smem [#allocation8], 0
      %218 = sst [smem:[%s217]] %s216
    $region25: #{tpu_custom_call.1} parent=1 // pred_fallthru
      _
    // Predicated region
    $region26: #{tpu_custom_call.1} parent=1 // pred_check
      _
    $region27: #{tpu_custom_call.1} parent=1 // pred_check_branch
      %220 = sbr.rel (0) target = $region29
    $region28: #{tpu_custom_call.1} parent=1 // pred_region
      %s222 = ssub.s32 16, 16
      %223 = vsyncadd [#allocation5], %s222
      %226 = dma.smem_to_hbm [#allocation8], 16, %s2, [#allocation5]
    $region29: #{tpu_custom_call.1} parent=1 // pred_fallthru
      _
    // Predicated region
    $region30: #{tpu_custom_call.1} parent=1 // pred_check
      _
    $region31: #{tpu_custom_call.1} parent=1 // pred_check_branch
      %228 = sbr.rel (0) target = $region33
    $region32: #{tpu_custom_call.1} parent=1 // pred_region
      %229 = dma.done [#allocation5], 16
    $region33: #{tpu_custom_call.1} parent=1 // pred_fallthru
      _
    %230 = sfence
    %231 = vsyncpa [#allocation4], 1
    %232 = vsyncpa [#allocation7], 1
    %233 = vsyncpa [#allocation5], 1

</llo_original>
